<compile_context>
chip_gen: v5e
topology: v5e:2x2
jax: 0.10.0
libtpu: 0.0.40
codegen_flags: <defaults>
</compile_context>

<pallas_src>
import jax
import jax.numpy as jnp
from jax.experimental import pallas as pl
from jax.experimental.pallas import tpu as pltpu

B_TILE = 128  # lanes per grid step (batch axis)


def nb2_kernel(x_ref, w_ref, b_ref, out_ref):
    """x_ref: (L, B_TILE) int32 VMEM; w_ref: (V, 1) f32 VMEM; b_ref: (1,) f32 SMEM;
    out_ref: (1, B_TILE) int32 VMEM (lane-dense predictions)."""
    L, Bt = x_ref.shape
    V = w_ref.shape[0]

    # vocab id per sublane row; generated once, 2D only (no (L,B,V) intermediate)
    ids = jax.lax.broadcasted_iota(jnp.int32, (V, Bt), 0)

    def or_step(l, f):
        row = x_ref[pl.ds(l, 1), :]            # (1, Bt) tokens, batch on lanes
        return jnp.logical_or(f, row == ids)   # (V, Bt) presence so far

    f = jax.lax.fori_loop(
        0, L, or_step, jnp.zeros((V, Bt), dtype=jnp.bool_), unroll=True)

    # score[b] = sum_v w[v] * f[v, b]  -- VPU select + XLU sublane reduce (no
    # single-output-column MXU matmul).
    contrib = jnp.where(f, w_ref[...], jnp.float32(0.0))   # (V, Bt) f32
    score = jnp.sum(contrib, axis=0, keepdims=True)        # (1, Bt) f32

    # torch: (sign(score + b) > 0).long()  ==  score > -b  (bias folded)
    out_ref[...] = (score > -b_ref[0]).astype(jnp.int32)


def nb2_forward(x, w, b):
    """x: (L, B) int tokens, w: (V,) f32, b: () f32 -> (B,) int32 predictions."""
    L, B = x.shape
    V = w.shape[0]

    n_tiles = pl.cdiv(B, B_TILE)
    Bp = n_tiles * B_TILE
    # Pad batch with out-of-vocab token ids; padded columns are sliced off below.
    # TODO(synk): optionally carry x as int16 when vsize <= 32767 to halve x DMA bytes.
    x_p = jnp.pad(x.astype(jnp.int32), ((0, 0), (0, Bp - B)), constant_values=V)
    w2d = w.astype(jnp.float32).reshape(V, 1)
    b1d = jnp.reshape(b, (1,)).astype(jnp.float32)

    out = pl.pallas_call(
        nb2_kernel,
        out_shape=jax.ShapeDtypeStruct((1, Bp), jnp.int32),
        grid=(n_tiles,),
        in_specs=[
            pl.BlockSpec((L, B_TILE), lambda i: (0, i)),        # x: batch-tiled
            pl.BlockSpec((V, 1), lambda i: (0, 0)),             # w: replicated
            pl.BlockSpec(memory_space=pltpu.MemorySpace.SMEM),  # b: SMEM scalar
        ],
        out_specs=pl.BlockSpec((1, B_TILE), lambda i: (0, i)),  # lane-dense preds
        compiler_params=pltpu.CompilerParams(
            dimension_semantics=("parallel",),      # megacore-shard batch on v7x
            vmem_limit_bytes=32 * 1024 * 1024,      # explicit budget (v7x: 64 MiB phys)
        ),
    )(x_p, w2d, b1d)
    # PyTorch returns int64 ("long"); we return int32 predictions.
    return out[0, :B]


def nb2_reference(x, w, b):
    """Pure-JAX reference mirroring NB2.forward / NB2.transform."""
    V = w.shape[0]
    f = jnp.any(
        x[:, :, None] == jnp.arange(V, dtype=jnp.int32)[None, None, :], axis=0)
    score = f.astype(jnp.float32) @ w + b          # (B,)
    return (jnp.sign(score) > 0).astype(jnp.int32)


if __name__ == "__main__":
    # Small synthetic setup consistent with NB2.__init__:
    #   vsize = len(vocab.itos) -> 128, nclass = 2, alpha = 1.0
    VSIZE = 128
    LENGTH = 8
    BATCH = 16
    ALPHA = 1.0

    key = jax.random.PRNGKey(0)
    k_x, k_p, k_q = jax.random.split(key, 3)

    # Deterministic synthetic "trained" NB statistics (what update_counts /
    # get_probs would have produced), then derive w and b exactly like get_probs():
    p = jax.random.uniform(k_p, (VSIZE,), minval=0.0, maxval=5.0) + ALPHA
    q = jax.random.uniform(k_q, (VSIZE,), minval=0.0, maxval=5.0) + ALPHA
    N = jnp.array([3.0, 5.0])
    p_normed = p / jnp.sum(jnp.abs(p))
    q_normed = q / jnp.sum(jnp.abs(q))
    w = jnp.log(p_normed / q_normed).astype(jnp.float32)        # (vsize,)
    b = jnp.log(N[1] / N[0]).astype(jnp.float32)                # scalar

    # x: (length, batch_size) token ids, as in forward()
    x = jax.random.randint(k_x, (LENGTH, BATCH), 0, VSIZE, dtype=jnp.int32)

    pred = nb2_forward(x, w, b)
    pred = jax.block_until_ready(pred)

    ref = nb2_reference(x, w, b)
    assert pred.shape == (BATCH,)
    assert jnp.array_equal(pred, ref), (pred, ref)

    print("KERNEL_OK")
</pallas_src>

<mosaic_0001>
module attributes {stable_mosaic.version = 11 : i64} {
  func.func @nb2_kernel(%arg0: i32, %arg1: memref<8x128xi32, #tpu.memory_space<vmem>>, %arg2: memref<128x1xf32, #tpu.memory_space<vmem>>, %arg3: memref<1xf32, #tpu.memory_space<smem>>, %arg4: memref<1x128xi32, #tpu.memory_space<vmem>>) attributes {dimension_semantics = [#tpu.dimension_semantics<parallel>], iteration_bounds = array<i64: 1>, scalar_prefetch = 0 : i64, scratch_operands = 0 : i64, tpu.core_type = #tpu.core_type<tc>, window_params = [{transform_indices = @transform_0, window_bounds = array<i64: 8, 128>}, {pipeline_mode = #tpu.pipeline_mode<synchronous>, transform_indices = @transform_1, window_bounds = array<i64: 128, 1>}, {transform_indices = @transform_2, window_bounds = array<i64: 1>}, {transform_indices = @transform_3, window_bounds = array<i64: 1, 128>}]} {
    %0 = tpu.iota {dimensions = array<i32: 0>} : vector<128x128xi32>
    %false = arith.constant false
    %1 = vector.broadcast %false : i1 to vector<128x128xi1>
    %c0_i32 = arith.constant 0 : i32
    %2 = arith.index_cast %c0_i32 : i32 to index
    %c0 = arith.constant 0 : index
    %3 = vector.load %arg1[%2, %c0] : memref<8x128xi32, #tpu.memory_space<vmem>>, vector<1x128xi32>
    %4 = vector.broadcast %3 : vector<1x128xi32> to vector<128x128xi32>
    %5 = arith.cmpi eq, %4, %0 : vector<128x128xi32>
    %6 = arith.ori %1, %5 : vector<128x128xi1>
    %c1_i32 = arith.constant 1 : i32
    %7 = arith.index_cast %c1_i32 : i32 to index
    %c0_0 = arith.constant 0 : index
    %8 = vector.load %arg1[%7, %c0_0] : memref<8x128xi32, #tpu.memory_space<vmem>>, vector<1x128xi32>
    %9 = vector.broadcast %8 : vector<1x128xi32> to vector<128x128xi32>
    %10 = arith.cmpi eq, %9, %0 : vector<128x128xi32>
    %11 = arith.ori %6, %10 : vector<128x128xi1>
    %c2_i32 = arith.constant 2 : i32
    %12 = arith.index_cast %c2_i32 : i32 to index
    %c0_1 = arith.constant 0 : index
    %13 = vector.load %arg1[%12, %c0_1] : memref<8x128xi32, #tpu.memory_space<vmem>>, vector<1x128xi32>
    %14 = vector.broadcast %13 : vector<1x128xi32> to vector<128x128xi32>
    %15 = arith.cmpi eq, %14, %0 : vector<128x128xi32>
    %16 = arith.ori %11, %15 : vector<128x128xi1>
    %c3_i32 = arith.constant 3 : i32
    %17 = arith.index_cast %c3_i32 : i32 to index
    %c0_2 = arith.constant 0 : index
    %18 = vector.load %arg1[%17, %c0_2] : memref<8x128xi32, #tpu.memory_space<vmem>>, vector<1x128xi32>
    %19 = vector.broadcast %18 : vector<1x128xi32> to vector<128x128xi32>
    %20 = arith.cmpi eq, %19, %0 : vector<128x128xi32>
    %21 = arith.ori %16, %20 : vector<128x128xi1>
    %c4_i32 = arith.constant 4 : i32
    %22 = arith.index_cast %c4_i32 : i32 to index
    %c0_3 = arith.constant 0 : index
    %23 = vector.load %arg1[%22, %c0_3] : memref<8x128xi32, #tpu.memory_space<vmem>>, vector<1x128xi32>
    %24 = vector.broadcast %23 : vector<1x128xi32> to vector<128x128xi32>
    %25 = arith.cmpi eq, %24, %0 : vector<128x128xi32>
    %26 = arith.ori %21, %25 : vector<128x128xi1>
    %c5_i32 = arith.constant 5 : i32
    %27 = arith.index_cast %c5_i32 : i32 to index
    %c0_4 = arith.constant 0 : index
    %28 = vector.load %arg1[%27, %c0_4] : memref<8x128xi32, #tpu.memory_space<vmem>>, vector<1x128xi32>
    %29 = vector.broadcast %28 : vector<1x128xi32> to vector<128x128xi32>
    %30 = arith.cmpi eq, %29, %0 : vector<128x128xi32>
    %31 = arith.ori %26, %30 : vector<128x128xi1>
    %c6_i32 = arith.constant 6 : i32
    %32 = arith.index_cast %c6_i32 : i32 to index
    %c0_5 = arith.constant 0 : index
    %33 = vector.load %arg1[%32, %c0_5] : memref<8x128xi32, #tpu.memory_space<vmem>>, vector<1x128xi32>
    %34 = vector.broadcast %33 : vector<1x128xi32> to vector<128x128xi32>
    %35 = arith.cmpi eq, %34, %0 : vector<128x128xi32>
    %36 = arith.ori %31, %35 : vector<128x128xi1>
    %c7_i32 = arith.constant 7 : i32
    %37 = arith.index_cast %c7_i32 : i32 to index
    %c0_6 = arith.constant 0 : index
    %38 = vector.load %arg1[%37, %c0_6] : memref<8x128xi32, #tpu.memory_space<vmem>>, vector<1x128xi32>
    %39 = vector.broadcast %38 : vector<1x128xi32> to vector<128x128xi32>
    %40 = arith.cmpi eq, %39, %0 : vector<128x128xi32>
    %41 = arith.ori %36, %40 : vector<128x128xi1>
    %c8_i32 = arith.constant 8 : i32
    %c0_7 = arith.constant 0 : index
    %c0_8 = arith.constant 0 : index
    %42 = vector.load %arg2[%c0_7, %c0_8] : memref<128x1xf32, #tpu.memory_space<vmem>>, vector<128x1xf32>
    %cst = arith.constant 0.000000e+00 : f32
    %43 = vector.shape_cast %42 : vector<128x1xf32> to vector<128x1xf32>
    %44 = vector.broadcast %43 : vector<128x1xf32> to vector<128x128xf32>
    %45 = vector.broadcast %cst : f32 to vector<128x128xf32>
    %46 = arith.select %41, %44, %45 : vector<128x128xi1>, vector<128x128xf32>
    %cst_9 = arith.constant dense<0.000000e+00> : vector<128xf32>
    %47 = vector.multi_reduction <add>, %46, %cst_9 [0] : vector<128x128xf32> to vector<128xf32>
    %48 = vector.shape_cast %47 : vector<128xf32> to vector<1x128xf32>
    %c0_10 = arith.constant 0 : index
    %49 = memref.load %arg3[%c0_10] : memref<1xf32, #tpu.memory_space<smem>>
    %cst_11 = arith.constant 0.000000e+00 : f32
    %50 = arith.subf %cst_11, %49 : f32
    %51 = vector.broadcast %50 : f32 to vector<1x128xf32>
    %52 = arith.cmpf ogt, %48, %51 : vector<1x128xf32>
    %53 = arith.extui %52 : vector<1x128xi1> to vector<1x128xi32>
    %c0_12 = arith.constant 0 : index
    %c0_13 = arith.constant 0 : index
    %54 = vector.load %arg4[%c0_12, %c0_13] : memref<1x128xi32, #tpu.memory_space<vmem>>, vector<1x128xi32>
    tpu.vector_store %arg4[%c0_12, %c0_13], %53 {strides = array<i32>} : memref<1x128xi32, #tpu.memory_space<vmem>>, vector<1x128xi32>,
    return
  }
  func.func @transform_0(%arg0: i32) -> (i32, i32) {
    %c0_i32 = arith.constant 0 : i32
    %c0_i32_0 = arith.constant 0 : i32
    return %c0_i32, %arg0 : i32, i32
  }
  func.func @transform_1(%arg0: i32) -> (i32, i32) {
    %c0_i32 = arith.constant 0 : i32
    %c0_i32_0 = arith.constant 0 : i32
    %c0_i32_1 = arith.constant 0 : i32
    return %c0_i32, %c0_i32_0 : i32, i32
  }
  func.func @transform_2(%arg0: i32) -> i32 {
    %c0_i32 = arith.constant 0 : i32
    %c0_i32_0 = arith.constant 0 : i32
    return %c0_i32 : i32
  }
  func.func @transform_3(%arg0: i32) -> (i32, i32) {
    %c0_i32 = arith.constant 0 : i32
    %c0_i32_0 = arith.constant 0 : i32
    return %c0_i32, %arg0 : i32, i32
  }
}

</mosaic_0001>

<llo_original>
// kernel: tpu_custom_call.1
$region0: #{tpu_custom_call.1}
  #allocation0 [shape = 'u32[]', space=smem, size = 0x4, offset = 0x4, fixed_abs, tag = 'smem constant byte address 0x4 - core index']
  #allocation1 [shape = 'u32[72,128]{1,0:T(1,128)}', space=vmem, size = 0x9000, scoped, tag = 'internal scratch']
  #allocation2 [shape = 'f32[1]{0:T(128)S(6)}', space=smem, size = 0x200, scoped, tag = 'scoped memory for tpu_custom_call.1']
  %s0 = inlined_call_operand.vmem [shape: s32[8,128], index: 0, kind: input, shape index: {}]
  %s1 = inlined_call_operand.vmem [shape: f32[128,1], index: 1, kind: input, shape index: {}]
  %s2 = inlined_call_operand.<no memory space> [shape: f32[1], index: 2, kind: input, shape index: {}]
  %s3 = inlined_call_operand.hbm [shape: s32[1,128], index: 3, kind: output, shape index: {}]
  %s4 = sld [smem:[#allocation0]]
  $region22: #{tpu_custom_call.1} parent=0
    _
  %s6 = ssub.s32 1, %s4
  %s7 = scalar_select 0, %s6, %s4
  %8 = sst [smem:[#allocation2]] %s2
  $region1: #{tpu_custom_call.1} parent=0
    #allocation3 [shape = 'u8[512]{0}', space=vmem, size = 0x400, scoped, tag = 'output window, operand 0, single buffered']
    #allocation4 [shape = 's32[1]{0}', space=sflag, size = 0x4, scoped, tag = 'scoped memory for tpu_custom_call.1']
    %9 = vsyncpa [#allocation4], 0
    // Predicated region
    $region2: #{tpu_custom_call.1} parent=1 // pred_check
      _
    $region3: #{tpu_custom_call.1} parent=1 // pred_check_branch
      %11 = sbr.rel (0) target = $region5
    $region4: #{tpu_custom_call.1} parent=1 // pred_region
      _
    $region5: #{tpu_custom_call.1} parent=1 // pred_fallthru
      _
    // Predicated region
    $region6: #{tpu_custom_call.1} parent=1 // pred_check
      _
    $region7: #{tpu_custom_call.1} parent=1 // pred_check_branch
      %13 = sbr.rel (0) target = $region9
    $region8: #{tpu_custom_call.1} parent=1 // pred_region
      _
    $region9: #{tpu_custom_call.1} parent=1 // pred_fallthru
      _
    // Predicated region
    $region10: #{tpu_custom_call.1} parent=1 // pred_check
      _
    $region11: #{tpu_custom_call.1} parent=1 // pred_check_branch
      %15 = sbr.rel (0) target = $region13
    $region12: #{tpu_custom_call.1} parent=1 // pred_region
      _
    $region13: #{tpu_custom_call.1} parent=1 // pred_fallthru
      _
    %v16 = vlaneseq
    %v17 = vshrl.u32 %v16, 7
    %v18 = vadd.s32 %v17, 8
    %v19 = vadd.s32 %v17, 16
    %v20 = vadd.s32 %v17, 24
    %v21 = vadd.s32 %v17, 32
    %v22 = vadd.s32 %v17, 40
    %v23 = vadd.s32 %v17, 48
    %v24 = vadd.s32 %v17, 56
    %v25 = vadd.s32 %v17, 64
    %v26 = vadd.s32 %v17, 72
    %v27 = vadd.s32 %v17, 80
    %v28 = vadd.s32 %v17, 88
    %v29 = vadd.s32 %v17, 96
    %v30 = vadd.s32 %v17, 104
    %v31 = vadd.s32 %v17, 112
    %v32 = vadd.s32 %v17, 120
    %v33 = vld [vmem:[%s0] sm:$0x1]
    %v34 = vperm.slane %v33, 0
    %vm35 = vcmp.eq.s32.totalorder %v34, %v17
    %vm36 = vcmp.eq.s32.totalorder %v34, %v18
    %vm37 = vcmp.eq.s32.totalorder %v34, %v19
    %vm38 = vcmp.eq.s32.totalorder %v34, %v20
    %vm39 = vcmp.eq.s32.totalorder %v34, %v21
    %vm40 = vcmp.eq.s32.totalorder %v34, %v22
    %vm41 = vcmp.eq.s32.totalorder %v34, %v23
    %vm42 = vcmp.eq.s32.totalorder %v34, %v24
    %vm43 = vcmp.eq.s32.totalorder %v34, %v25
    %vm44 = vcmp.eq.s32.totalorder %v34, %v26
    %vm45 = vcmp.eq.s32.totalorder %v34, %v27
    %vm46 = vcmp.eq.s32.totalorder %v34, %v28
    %vm47 = vcmp.eq.s32.totalorder %v34, %v29
    %vm48 = vcmp.eq.s32.totalorder %v34, %v30
    %vm49 = vcmp.eq.s32.totalorder %v34, %v31
    %vm50 = vcmp.eq.s32.totalorder %v34, %v32
    %v51 = vld [vmem:[%s0 + $0x1] sm:$0x1]
    %v52 = vperm.slane %v51, 0
    %vm53 = vcmp.eq.s32.totalorder %v52, %v17
    %vm54 = vcmp.eq.s32.totalorder %v52, %v18
    %vm55 = vcmp.eq.s32.totalorder %v52, %v19
    %vm56 = vcmp.eq.s32.totalorder %v52, %v20
    %vm57 = vcmp.eq.s32.totalorder %v52, %v21
    %vm58 = vcmp.eq.s32.totalorder %v52, %v22
    %vm59 = vcmp.eq.s32.totalorder %v52, %v23
    %vm60 = vcmp.eq.s32.totalorder %v52, %v24
    %vm61 = vcmp.eq.s32.totalorder %v52, %v25
    %vm62 = vcmp.eq.s32.totalorder %v52, %v26
    %vm63 = vcmp.eq.s32.totalorder %v52, %v27
    %vm64 = vcmp.eq.s32.totalorder %v52, %v28
    %vm65 = vcmp.eq.s32.totalorder %v52, %v29
    %vm66 = vcmp.eq.s32.totalorder %v52, %v30
    %vm67 = vcmp.eq.s32.totalorder %v52, %v31
    %vm68 = vcmp.eq.s32.totalorder %v52, %v32
    %vm69 = vmor %vm35, %vm53
    %vm70 = vmor %vm36, %vm54
    %vm71 = vmor %vm37, %vm55
    %vm72 = vmor %vm38, %vm56
    %vm73 = vmor %vm39, %vm57
    %vm74 = vmor %vm40, %vm58
    %vm75 = vmor %vm41, %vm59
    %vm76 = vmor %vm42, %vm60
    %vm77 = vmor %vm43, %vm61
    %vm78 = vmor %vm44, %vm62
    %vm79 = vmor %vm45, %vm63
    %vm80 = vmor %vm46, %vm64
    %vm81 = vmor %vm47, %vm65
    %vm82 = vmor %vm48, %vm66
    %vm83 = vmor %vm49, %vm67
    %vm84 = vmor %vm50, %vm68
    %v85 = vld [vmem:[%s0 + $0x2] sm:$0x1]
    %v86 = vperm.slane %v85, 0
    %vm87 = vcmp.eq.s32.totalorder %v86, %v17
    %vm88 = vcmp.eq.s32.totalorder %v86, %v18
    %vm89 = vcmp.eq.s32.totalorder %v86, %v19
    %vm90 = vcmp.eq.s32.totalorder %v86, %v20
    %vm91 = vcmp.eq.s32.totalorder %v86, %v21
    %vm92 = vcmp.eq.s32.totalorder %v86, %v22
    %vm93 = vcmp.eq.s32.totalorder %v86, %v23
    %vm94 = vcmp.eq.s32.totalorder %v86, %v24
    %vm95 = vcmp.eq.s32.totalorder %v86, %v25
    %vm96 = vcmp.eq.s32.totalorder %v86, %v26
    %vm97 = vcmp.eq.s32.totalorder %v86, %v27
    %vm98 = vcmp.eq.s32.totalorder %v86, %v28
    %vm99 = vcmp.eq.s32.totalorder %v86, %v29
    %vm100 = vcmp.eq.s32.totalorder %v86, %v30
    %vm101 = vcmp.eq.s32.totalorder %v86, %v31
    %vm102 = vcmp.eq.s32.totalorder %v86, %v32
    %vm103 = vmor %vm69, %vm87
    %vm104 = vmor %vm70, %vm88
    %vm105 = vmor %vm71, %vm89
    %vm106 = vmor %vm72, %vm90
    %vm107 = vmor %vm73, %vm91
    %vm108 = vmor %vm74, %vm92
    %vm109 = vmor %vm75, %vm93
    %vm110 = vmor %vm76, %vm94
    %vm111 = vmor %vm77, %vm95
    %vm112 = vmor %vm78, %vm96
    %vm113 = vmor %vm79, %vm97
    %vm114 = vmor %vm80, %vm98
    %vm115 = vmor %vm81, %vm99
    %vm116 = vmor %vm82, %vm100
    %vm117 = vmor %vm83, %vm101
    %vm118 = vmor %vm84, %vm102
    %v119 = vld [vmem:[%s0 + $0x3] sm:$0x1]
    %v120 = vperm.slane %v119, 0
    %vm121 = vcmp.eq.s32.totalorder %v120, %v17
    %vm122 = vcmp.eq.s32.totalorder %v120, %v18
    %vm123 = vcmp.eq.s32.totalorder %v120, %v19
    %vm124 = vcmp.eq.s32.totalorder %v120, %v20
    %vm125 = vcmp.eq.s32.totalorder %v120, %v21
    %vm126 = vcmp.eq.s32.totalorder %v120, %v22
    %vm127 = vcmp.eq.s32.totalorder %v120, %v23
    %vm128 = vcmp.eq.s32.totalorder %v120, %v24
    %vm129 = vcmp.eq.s32.totalorder %v120, %v25
    %vm130 = vcmp.eq.s32.totalorder %v120, %v26
    %vm131 = vcmp.eq.s32.totalorder %v120, %v27
    %vm132 = vcmp.eq.s32.totalorder %v120, %v28
    %vm133 = vcmp.eq.s32.totalorder %v120, %v29
    %vm134 = vcmp.eq.s32.totalorder %v120, %v30
    %vm135 = vcmp.eq.s32.totalorder %v120, %v31
    %vm136 = vcmp.eq.s32.totalorder %v120, %v32
    %vm137 = vmor %vm103, %vm121
    %vm138 = vmor %vm104, %vm122
    %vm139 = vmor %vm105, %vm123
    %vm140 = vmor %vm106, %vm124
    %vm141 = vmor %vm107, %vm125
    %vm142 = vmor %vm108, %vm126
    %vm143 = vmor %vm109, %vm127
    %vm144 = vmor %vm110, %vm128
    %vm145 = vmor %vm111, %vm129
    %vm146 = vmor %vm112, %vm130
    %vm147 = vmor %vm113, %vm131
    %vm148 = vmor %vm114, %vm132
    %vm149 = vmor %vm115, %vm133
    %vm150 = vmor %vm116, %vm134
    %vm151 = vmor %vm117, %vm135
    %vm152 = vmor %vm118, %vm136
    %v153 = vld [vmem:[%s0 + $0x4] sm:$0x1]
    %v154 = vperm.slane %v153, 0
    %vm155 = vcmp.eq.s32.totalorder %v154, %v17
    %vm156 = vcmp.eq.s32.totalorder %v154, %v18
    %vm157 = vcmp.eq.s32.totalorder %v154, %v19
    %vm158 = vcmp.eq.s32.totalorder %v154, %v20
    %vm159 = vcmp.eq.s32.totalorder %v154, %v21
    %vm160 = vcmp.eq.s32.totalorder %v154, %v22
    %vm161 = vcmp.eq.s32.totalorder %v154, %v23
    %vm162 = vcmp.eq.s32.totalorder %v154, %v24
    %vm163 = vcmp.eq.s32.totalorder %v154, %v25
    %vm164 = vcmp.eq.s32.totalorder %v154, %v26
    %vm165 = vcmp.eq.s32.totalorder %v154, %v27
    %vm166 = vcmp.eq.s32.totalorder %v154, %v28
    %vm167 = vcmp.eq.s32.totalorder %v154, %v29
    %vm168 = vcmp.eq.s32.totalorder %v154, %v30
    %vm169 = vcmp.eq.s32.totalorder %v154, %v31
    %vm170 = vcmp.eq.s32.totalorder %v154, %v32
    %vm171 = vmor %vm137, %vm155
    %vm172 = vmor %vm138, %vm156
    %vm173 = vmor %vm139, %vm157
    %vm174 = vmor %vm140, %vm158
    %vm175 = vmor %vm141, %vm159
    %vm176 = vmor %vm142, %vm160
    %vm177 = vmor %vm143, %vm161
    %vm178 = vmor %vm144, %vm162
    %vm179 = vmor %vm145, %vm163
    %vm180 = vmor %vm146, %vm164
    %vm181 = vmor %vm147, %vm165
    %vm182 = vmor %vm148, %vm166
    %vm183 = vmor %vm149, %vm167
    %vm184 = vmor %vm150, %vm168
    %vm185 = vmor %vm151, %vm169
    %vm186 = vmor %vm152, %vm170
    %v187 = vld [vmem:[%s0 + $0x5] sm:$0x1]
    %v188 = vperm.slane %v187, 0
    %vm189 = vcmp.eq.s32.totalorder %v188, %v17
    %vm190 = vcmp.eq.s32.totalorder %v188, %v18
    %vm191 = vcmp.eq.s32.totalorder %v188, %v19
    %vm192 = vcmp.eq.s32.totalorder %v188, %v20
    %vm193 = vcmp.eq.s32.totalorder %v188, %v21
    %vm194 = vcmp.eq.s32.totalorder %v188, %v22
    %vm195 = vcmp.eq.s32.totalorder %v188, %v23
    %vm196 = vcmp.eq.s32.totalorder %v188, %v24
    %vm197 = vcmp.eq.s32.totalorder %v188, %v25
    %vm198 = vcmp.eq.s32.totalorder %v188, %v26
    %vm199 = vcmp.eq.s32.totalorder %v188, %v27
    %vm200 = vcmp.eq.s32.totalorder %v188, %v28
    %vm201 = vcmp.eq.s32.totalorder %v188, %v29
    %vm202 = vcmp.eq.s32.totalorder %v188, %v30
    %vm203 = vcmp.eq.s32.totalorder %v188, %v31
    %vm204 = vcmp.eq.s32.totalorder %v188, %v32
    %vm205 = vmor %vm171, %vm189
    %vm206 = vmor %vm172, %vm190
    %vm207 = vmor %vm173, %vm191
    %vm208 = vmor %vm174, %vm192
    %vm209 = vmor %vm175, %vm193
    %vm210 = vmor %vm176, %vm194
    %vm211 = vmor %vm177, %vm195
    %vm212 = vmor %vm178, %vm196
    %vm213 = vmor %vm179, %vm197
    %vm214 = vmor %vm180, %vm198
    %vm215 = vmor %vm181, %vm199
    %vm216 = vmor %vm182, %vm200
    %vm217 = vmor %vm183, %vm201
    %vm218 = vmor %vm184, %vm202
    %vm219 = vmor %vm185, %vm203
    %vm220 = vmor %vm186, %vm204
    %v221 = vld [vmem:[%s0 + $0x6] sm:$0x1]
    %v222 = vperm.slane %v221, 0
    %vm223 = vcmp.eq.s32.totalorder %v222, %v17
    %vm224 = vcmp.eq.s32.totalorder %v222, %v18
    %vm225 = vcmp.eq.s32.totalorder %v222, %v19
    %vm226 = vcmp.eq.s32.totalorder %v222, %v20
    %vm227 = vcmp.eq.s32.totalorder %v222, %v21
    %vm228 = vcmp.eq.s32.totalorder %v222, %v22
    %vm229 = vcmp.eq.s32.totalorder %v222, %v23
    %vm230 = vcmp.eq.s32.totalorder %v222, %v24
    %vm231 = vcmp.eq.s32.totalorder %v222, %v25
    %vm232 = vcmp.eq.s32.totalorder %v222, %v26
    %vm233 = vcmp.eq.s32.totalorder %v222, %v27
    %vm234 = vcmp.eq.s32.totalorder %v222, %v28
    %vm235 = vcmp.eq.s32.totalorder %v222, %v29
    %vm236 = vcmp.eq.s32.totalorder %v222, %v30
    %vm237 = vcmp.eq.s32.totalorder %v222, %v31
    %vm238 = vcmp.eq.s32.totalorder %v222, %v32
    %vm239 = vmor %vm205, %vm223
    %vm240 = vmor %vm206, %vm224
    %vm241 = vmor %vm207, %vm225
    %vm242 = vmor %vm208, %vm226
    %vm243 = vmor %vm209, %vm227
    %vm244 = vmor %vm210, %vm228
    %vm245 = vmor %vm211, %vm229
    %vm246 = vmor %vm212, %vm230
    %vm247 = vmor %vm213, %vm231
    %vm248 = vmor %vm214, %vm232
    %vm249 = vmor %vm215, %vm233
    %vm250 = vmor %vm216, %vm234
    %vm251 = vmor %vm217, %vm235
    %vm252 = vmor %vm218, %vm236
    %vm253 = vmor %vm219, %vm237
    %vm254 = vmor %vm220, %vm238
    %v255 = vld [vmem:[%s0 + $0x7] sm:$0x1]
    %v256 = vperm.slane %v255, 0
    %vm257 = vcmp.eq.s32.totalorder %v256, %v17
    %vm258 = vcmp.eq.s32.totalorder %v256, %v18
    %vm259 = vcmp.eq.s32.totalorder %v256, %v19
    %vm260 = vcmp.eq.s32.totalorder %v256, %v20
    %vm261 = vcmp.eq.s32.totalorder %v256, %v21
    %vm262 = vcmp.eq.s32.totalorder %v256, %v22
    %vm263 = vcmp.eq.s32.totalorder %v256, %v23
    %vm264 = vcmp.eq.s32.totalorder %v256, %v24
    %vm265 = vcmp.eq.s32.totalorder %v256, %v25
    %vm266 = vcmp.eq.s32.totalorder %v256, %v26
    %vm267 = vcmp.eq.s32.totalorder %v256, %v27
    %vm268 = vcmp.eq.s32.totalorder %v256, %v28
    %vm269 = vcmp.eq.s32.totalorder %v256, %v29
    %vm270 = vcmp.eq.s32.totalorder %v256, %v30
    %vm271 = vcmp.eq.s32.totalorder %v256, %v31
    %vm272 = vcmp.eq.s32.totalorder %v256, %v32
    %vm273 = vmor %vm239, %vm257
    %vm274 = vmor %vm240, %vm258
    %vm275 = vmor %vm241, %vm259
    %vm276 = vmor %vm242, %vm260
    %vm277 = vmor %vm243, %vm261
    %vm278 = vmor %vm244, %vm262
    %vm279 = vmor %vm245, %vm263
    %vm280 = vmor %vm246, %vm264
    %vm281 = vmor %vm247, %vm265
    %vm282 = vmor %vm248, %vm266
    %vm283 = vmor %vm249, %vm267
    %vm284 = vmor %vm250, %vm268
    %vm285 = vmor %vm251, %vm269
    %vm286 = vmor %vm252, %vm270
    %vm287 = vmor %vm253, %vm271
    %vm288 = vmor %vm254, %vm272
    %v289 = vld [vmem:[%s1] sm:$0xff]
    %v290 = vld [vmem:[%s1 + $0x8] sm:$0xff]
    %v291 = vld [vmem:[%s1 + $0x10] sm:$0xff]
    %v292 = vld [vmem:[%s1 + $0x18] sm:$0xff]
    %v293 = vld [vmem:[%s1 + $0x20] sm:$0xff]
    %v294 = vld [vmem:[%s1 + $0x28] sm:$0xff]
    %v295 = vld [vmem:[%s1 + $0x30] sm:$0xff]
    %v296 = vld [vmem:[%s1 + $0x38] sm:$0xff]
    %v297 = vld [vmem:[%s1 + $0x40] sm:$0xff]
    %v298 = vld [vmem:[%s1 + $0x48] sm:$0xff]
    %v299 = vld [vmem:[%s1 + $0x50] sm:$0xff]
    %v300 = vld [vmem:[%s1 + $0x58] sm:$0xff]
    %v301 = vld [vmem:[%s1 + $0x60] sm:$0xff]
    %v302 = vld [vmem:[%s1 + $0x68] sm:$0xff]
    %v303 = vld [vmem:[%s1 + $0x70] sm:$0xff]
    %v304 = vld [vmem:[%s1 + $0x78] sm:$0xff]
    %306 = vset.pattern.permute.xlu0 0
    %307 = vperm.xlu0 %306, %v289
    %v308 = vpop.permute.xlu0 %307
    %311 = vset.pattern.permute.xlu0 0
    %312 = vperm.xlu0 %311, %v290
    %v313 = vpop.permute.xlu0 %312
    %316 = vset.pattern.permute.xlu0 0
    %317 = vperm.xlu0 %316, %v291
    %v318 = vpop.permute.xlu0 %317
    %321 = vset.pattern.permute.xlu0 0
    %322 = vperm.xlu0 %321, %v292
    %v323 = vpop.permute.xlu0 %322
    %326 = vset.pattern.permute.xlu0 0
    %327 = vperm.xlu0 %326, %v293
    %v328 = vpop.permute.xlu0 %327
    %331 = vset.pattern.permute.xlu0 0
    %332 = vperm.xlu0 %331, %v294
    %v333 = vpop.permute.xlu0 %332
    %336 = vset.pattern.permute.xlu0 0
    %337 = vperm.xlu0 %336, %v295
    %v338 = vpop.permute.xlu0 %337
    %341 = vset.pattern.permute.xlu0 0
    %342 = vperm.xlu0 %341, %v296
    %v343 = vpop.permute.xlu0 %342
    %346 = vset.pattern.permute.xlu0 0
    %347 = vperm.xlu0 %346, %v297
    %v348 = vpop.permute.xlu0 %347
    %351 = vset.pattern.permute.xlu0 0
    %352 = vperm.xlu0 %351, %v298
    %v353 = vpop.permute.xlu0 %352
    %356 = vset.pattern.permute.xlu0 0
    %357 = vperm.xlu0 %356, %v299
    %v358 = vpop.permute.xlu0 %357
    %361 = vset.pattern.permute.xlu0 0
    %362 = vperm.xlu0 %361, %v300
    %v363 = vpop.permute.xlu0 %362
    %366 = vset.pattern.permute.xlu0 0
    %367 = vperm.xlu0 %366, %v301
    %v368 = vpop.permute.xlu0 %367
    %371 = vset.pattern.permute.xlu0 0
    %372 = vperm.xlu0 %371, %v302
    %v373 = vpop.permute.xlu0 %372
    %376 = vset.pattern.permute.xlu0 0
    %377 = vperm.xlu0 %376, %v303
    %v378 = vpop.permute.xlu0 %377
    %381 = vset.pattern.permute.xlu0 0
    %382 = vperm.xlu0 %381, %v304
    %v383 = vpop.permute.xlu0 %382
    %v385 = vsel %vm273, %v308, 0.0
    %v386 = vsel %vm274, %v313, 0.0
    %v387 = vsel %vm275, %v318, 0.0
    %v388 = vsel %vm276, %v323, 0.0
    %v389 = vsel %vm277, %v328, 0.0
    %v390 = vsel %vm278, %v333, 0.0
    %v391 = vsel %vm279, %v338, 0.0
    %v392 = vsel %vm280, %v343, 0.0
    %v393 = vsel %vm281, %v348, 0.0
    %v394 = vsel %vm282, %v353, 0.0
    %v395 = vsel %vm283, %v358, 0.0
    %v396 = vsel %vm284, %v363, 0.0
    %v397 = vsel %vm285, %v368, 0.0
    %v398 = vsel %vm286, %v373, 0.0
    %v399 = vsel %vm287, %v378, 0.0
    %v400 = vsel %vm288, %v383, 0.0
    %v401 = vadd.f32 %v385, %v386
    %v402 = vadd.f32 %v401, %v387
    %v403 = vadd.f32 %v402, %v388
    %v404 = vadd.f32 %v403, %v389
    %v405 = vadd.f32 %v404, %v390
    %v406 = vadd.f32 %v405, %v391
    %v407 = vadd.f32 %v406, %v392
    %v408 = vadd.f32 %v407, %v393
    %v409 = vadd.f32 %v408, %v394
    %v410 = vadd.f32 %v409, %v395
    %v411 = vadd.f32 %v410, %v396
    %v412 = vadd.f32 %v411, %v397
    %v413 = vadd.f32 %v412, %v398
    %v414 = vadd.f32 %v413, %v399
    %v415 = vadd.f32 %v414, %v400
    %v416 = vrot.slane %v415, 4
    %v417 = vadd.f32 %v415, %v416
    %v418 = vrot.slane %v417, 2
    %v419 = vadd.f32 %v417, %v418
    %v420 = vrot.slane %v419, 1
    %v421 = vadd.f32 %v419, %v420
    %s422 = sld [smem:[#allocation2]]
    %s423 = ssub.f32 0.0, %s422
    %v424 = vstv %s423
    %vm425 = vcmp.gt.f32.partialorder %v421, %v424
    %v426 = vsel %vm425, 1, 0
    %427 = vst [vmem:[#allocation3] sm:$0x1] %v426
    // Predicated region
    $region14: #{tpu_custom_call.1} parent=1 // pred_check
      _
    $region15: #{tpu_custom_call.1} parent=1 // pred_check_branch
      %429 = sbr.rel (0) target = $region17
    $region16: #{tpu_custom_call.1} parent=1 // pred_region
      %431 = vsyncadd [#allocation4], 0
      %s433 = sshll.u32 [#allocation3], 4
      %s434 = int_to_ptr.vmem [resolvable:$true] %s433
      %s435 = sshll.u32 %s3, 4
      %s436 = int_to_ptr.hbm [resolvable:$true] %s435
      %438 = dma.vmem_to_hbm [thread:$0]  %s434, 16, %s436, [#allocation4]
    $region17: #{tpu_custom_call.1} parent=1 // pred_fallthru
      _
    // Predicated region
    $region18: #{tpu_custom_call.1} parent=1 // pred_check
      _
    $region19: #{tpu_custom_call.1} parent=1 // pred_check_branch
      %440 = sbr.rel (0) target = $region21
    $region20: #{tpu_custom_call.1} parent=1 // pred_region
      %442 = dma.done [#allocation4], 16
    $region21: #{tpu_custom_call.1} parent=1 // pred_fallthru
      _
    %443 = vsyncpa [#allocation4], 1

</llo_original>
